<compile_context>
chip_gen: v5e
topology: v5e:2x2
jax: 0.10.0
libtpu: 0.0.40
codegen_flags: <defaults>
</compile_context>

<pallas_src>
import functools

import jax
import jax.numpy as jnp
from jax import lax
from jax.experimental import pallas as pl
from jax.experimental.pallas import tpu as pltpu


def _linear_attention_kernel(x_ref, w_ref, b_ref, o_ref, q_scr, kv_scr, *,
                             d_model, d_pad, v_pad, chunk, mm_dtype):
    """One batch element per grid step.

    x_ref : (N, D)          input block (mm_dtype)
    w_ref : (D, Wpad)       fused pre-transposed weights (lane-aligned segments)
    b_ref : (1, Wpad)       fused bias (f32), ones-column bias folded in
    o_ref : (N, Dpad)       lane-dense output block
    q_scr : (N, Dpad) f32   Q stash (phase 1 -> phase 2)
    kv_scr: (Dpad, Vpad) f32 accumulator for K^T [V | 1]
    """
    D, Dp, Vp = d_model, d_pad, v_pad
    N = x_ref.shape[0]
    n_chunks = N // chunk
    f32 = jnp.float32
    is_f32_mm = jnp.dtype(mm_dtype) == jnp.dtype(jnp.float32)

    w = w_ref[...]                                       # (D, Wpad) mm_dtype
    b = b_ref[...]                                       # (1, Wpad) f32

    # +1e-6 only on the D real feature lanes; padded lanes stay exactly 0.
    lane = lax.broadcasted_iota(jnp.int32, (1, Dp), 1)
    eps = jnp.where(lane < D, jnp.float32(1e-6), jnp.float32(0.0))

    kv_scr[...] = jnp.zeros_like(kv_scr)

    def _chunk_start(c):
        start = c * chunk
        if isinstance(start, int):
            return start
        return pl.multiple_of(start, chunk)

    # ---- Phase 1: fused projection + KV_aug accumulation per N-chunk -------
    def phase1(c):
        start = _chunk_start(c)
        x_c = x_ref[pl.ds(start, chunk), :]                              # (chunk, D)
        proj = jnp.dot(x_c, w, preferred_element_type=f32) + b           # (chunk, Wpad) f32
        q_c = jnp.maximum(proj[:, 0:Dp], 0.0) + eps                      # (chunk, Dp)
        k_c = jnp.maximum(proj[:, Dp:2 * Dp], 0.0) + eps                 # (chunk, Dp)
        v_c = proj[:, 2 * Dp:2 * Dp + Vp]                                # (chunk, Vp) = [V | 1 | 0]
        q_scr[pl.ds(start, chunk), :] = q_c
        kv_scr[...] += lax.dot_general(                                  # K^T @ [V | 1]
            k_c.astype(mm_dtype), v_c.astype(mm_dtype),
            dimension_numbers=(((0,), (0,)), ((), ())),
            preferred_element_type=f32)                                  # (Dp, Vp)

    if n_chunks == 1:
        phase1(0)
    else:
        lax.fori_loop(0, n_chunks, lambda c, _: (phase1(c), 0)[1], 0)

    kv_f32 = kv_scr[...]                                 # (Dp, Vp) f32
    kv_mm = kv_f32.astype(mm_dtype)
    ksum_col = kv_f32[:, D:D + 1]                        # (Dp, 1) f32 exact k_sum

    # ---- Phase 2: normalize and store per N-chunk ---------------------------
    def phase2(c):
        start = _chunk_start(c)
        q_c = q_scr[pl.ds(start, chunk), :]                              # (chunk, Dp) f32
        out_aug = jnp.dot(q_c.astype(mm_dtype), kv_mm,
                          preferred_element_type=f32)                    # (chunk, Vp)
        if is_f32_mm:
            denom = out_aug[:, D:D + 1] + 1e-6                           # folded column
        else:
            # keep the O(N)-magnitude denominator fully in f32 on the bf16 path
            denom = jnp.dot(q_c, ksum_col, preferred_element_type=f32) + 1e-6
        r = pl.reciprocal(denom, approx=True)            # EUP seed
        r = r * (2.0 - denom * r)                        # one Newton step
        o_ref[pl.ds(start, chunk), :] = (out_aug[:, 0:Dp] * r).astype(o_ref.dtype)

    if n_chunks == 1:
        phase2(0)
    else:
        lax.fori_loop(0, n_chunks, lambda c, _: (phase2(c), 0)[1], 0)


def _pick_chunk(n, target=512):
    """Largest multiple-of-8 divisor of n that is <= target (else n itself)."""
    if n <= target:
        return n
    c = (target // 8) * 8
    while c >= 8:
        if n % c == 0:
            return c
        c -= 8
    return n  # TODO(synk): masked tail chunk for ragged N instead of full-N fallback


def _vmem_limit_bytes():
    """Generation-aware VMEM limit: ~0.75 of physical capacity, clamped."""
    cap = None
    try:
        info = pltpu.get_tpu_info()
        for name in ("vmem_capacity_bytes", "vmem_size_bytes", "vmem_bytes"):
            cap = getattr(info, name, None)
            if cap:
                break
    except Exception:
        cap = None
    if not cap:
        cap = 64 * 1024 * 1024           # conservative (v7x per-core) fallback
    return int(min(max(cap * 3 // 4, 32 * 1024 * 1024), 112 * 1024 * 1024))


def linear_attention(x, wq, bq, wk, bk, wv, bv, *, matmul_dtype=None,
                     chunk_target=512):
    """x: (B, N, D). wq/wk/wv: (D, D) PyTorch Linear weights; bq/bk/bv: (D,).

    matmul_dtype=None -> bf16 MXU inputs (f32 accumulation, f32 epilogue, f32
    denominator) as the default fast path on v5e/v6e/v7x; pass jnp.float32 when
    ~1e-4 accuracy is contractually required.
    """
    B, N, D = x.shape
    out_dtype = x.dtype
    if matmul_dtype is None:
        matmul_dtype = jnp.bfloat16

    Dpad = pl.cdiv(D, 128) * 128
    Vpad = pl.cdiv(D + 1, 128) * 128
    Wpad = 2 * Dpad + Vpad
    chunk = _pick_chunk(N, chunk_target)

    # Fused, pre-transposed, 128-lane-aligned weight/bias slabs:
    #   cols [0, D)               -> Wq^T   (zero-padded to Dpad)
    #   cols [Dpad, Dpad+D)       -> Wk^T   (zero-padded to 2*Dpad)
    #   cols [2*Dpad, 2*Dpad+D)   -> Wv^T
    #   col   2*Dpad + D          -> zero weight, bias 1  (folded denominator)
    w_fused = jnp.zeros((D, Wpad), jnp.float32)
    w_fused = w_fused.at[:, 0:D].set(wq.T)
    w_fused = w_fused.at[:, Dpad:Dpad + D].set(wk.T)
    w_fused = w_fused.at[:, 2 * Dpad:2 * Dpad + D].set(wv.T)
    b_fused = jnp.zeros((1, Wpad), jnp.float32)
    b_fused = b_fused.at[0, 0:D].set(bq)
    b_fused = b_fused.at[0, Dpad:Dpad + D].set(bk)
    b_fused = b_fused.at[0, 2 * Dpad:2 * Dpad + D].set(bv)
    b_fused = b_fused.at[0, 2 * Dpad + D].set(1.0)

    x_mm = x.astype(matmul_dtype)
    w_mm = w_fused.astype(matmul_dtype)

    kernel = functools.partial(_linear_attention_kernel, d_model=D, d_pad=Dpad,
                               v_pad=Vpad, chunk=chunk, mm_dtype=matmul_dtype)

    mm_item = jnp.dtype(matmul_dtype).itemsize
    cost = pl.CostEstimate(
        flops=int(2 * B * N * D * Wpad + 4 * B * N * Dpad * Vpad),
        transcendentals=int(B * N),
        bytes_accessed=int(B * N * D * mm_item + D * Wpad * mm_item + 4 * Wpad
                           + B * N * Dpad * jnp.dtype(out_dtype).itemsize))

    out_padded = pl.pallas_call(
        kernel,
        out_shape=jax.ShapeDtypeStruct((B, N, Dpad), out_dtype),
        grid_spec=pltpu.PrefetchScalarGridSpec(
            num_scalar_prefetch=0,
            grid=(B,),
            in_specs=[
                pl.BlockSpec((pl.Squeezed(), N, D), lambda b: (b, 0, 0)),   # x
                # TODO(synk): single-buffer these grid-constant blocks
                # (pipeline_mode=pl.Buffered(1)) once verified on the target jax.
                pl.BlockSpec((D, Wpad), lambda b: (0, 0)),                  # fused W
                pl.BlockSpec((1, Wpad), lambda b: (0, 0)),                  # fused bias
            ],
            out_specs=pl.BlockSpec((pl.Squeezed(), N, Dpad), lambda b: (b, 0, 0)),
            scratch_shapes=[
                pltpu.VMEM((N, Dpad), jnp.float32),      # Q stash (phase 1 -> 2)
                pltpu.VMEM((Dpad, Vpad), jnp.float32),   # KV_aug accumulator
            ]),
        compiler_params=pltpu.CompilerParams(
            dimension_semantics=("parallel",),           # batch across TCs on v7x
            vmem_limit_bytes=_vmem_limit_bytes()),
        cost_estimate=cost,
    )(x_mm, w_mm, b_fused)

    # TODO(synk): expose an output-chunk "parallel" grid axis so v7x's second
    # TensorCore gets work when B == 1 (requires splitting phase 1 / phase 2).
    return out_padded if Dpad == D else out_padded[..., :D]


def _reference(x, wq, bq, wk, bk, wv, bv):
    """Plain-JAX reference mirroring the PyTorch module (f32 throughout)."""
    fm = lambda t: jnp.maximum(t, 0.0) + 1e-6
    Q = fm(jnp.einsum('bnd,ed->bne', x, wq) + bq)
    K = fm(jnp.einsum('bnd,ed->bne', x, wk) + bk)
    V = jnp.einsum('bnd,ed->bne', x, wv) + bv
    KV = jnp.einsum('bnd,bne->bde', K, V)
    Z = 1.0 / (jnp.einsum('bnd,bd->bn', Q, K.sum(axis=1)) + 1e-6)
    return jnp.einsum('bnd,bde,bn->bne', Q, KV, Z)


if __name__ == "__main__":
    B, N, D = 2, 8, 32
    key = jax.random.PRNGKey(0)
    kx, kwq, kbq, kwk, kbk, kwv, kbv = jax.random.split(key, 7)

    x = jax.random.normal(kx, (B, N, D), dtype=jnp.float32)
    bound = 1.0 / (D ** 0.5)
    wq = jax.random.uniform(kwq, (D, D), jnp.float32, -bound, bound)
    bq = jax.random.uniform(kbq, (D,), jnp.float32, -bound, bound)
    wk = jax.random.uniform(kwk, (D, D), jnp.float32, -bound, bound)
    bk = jax.random.uniform(kbk, (D,), jnp.float32, -bound, bound)
    wv = jax.random.uniform(kwv, (D, D), jnp.float32, -bound, bound)
    bv = jax.random.uniform(kbv, (D,), jnp.float32, -bound, bound)

    ref = _reference(x, wq, bq, wk, bk, wv, bv)

    # f32 MXU path: must match the module to tight tolerance.
    out = jax.block_until_ready(
        linear_attention(x, wq, bq, wk, bk, wv, bv, matmul_dtype=jnp.float32))
    assert out.shape == (B, N, D)
    err = float(jnp.max(jnp.abs(out - ref)))
    assert jnp.allclose(out, ref, atol=1e-4, rtol=1e-4), f"f32 path max abs err {err}"

    # Default fast path: bf16 MXU inputs, f32 accumulation + f32 denominator.
    out_fast = jax.block_until_ready(linear_attention(x, wq, bq, wk, bk, wv, bv))
    assert out_fast.shape == (B, N, D)
    err16 = float(jnp.max(jnp.abs(out_fast - ref)))
    assert jnp.allclose(out_fast, ref, atol=3e-2, rtol=3e-2), \
        f"bf16 path max abs err {err16}"

    print("KERNEL_OK")
</pallas_src>

<mosaic_0001>
module attributes {stable_mosaic.version = 11 : i64} {
  func.func @_linear_attention_kernel(%arg0: i32, %arg1: memref<1x8x32xf32, #tpu.memory_space<vmem>>, %arg2: memref<32x384xf32, #tpu.memory_space<vmem>>, %arg3: memref<1x384xf32, #tpu.memory_space<vmem>>, %arg4: memref<1x8x128xf32, #tpu.memory_space<vmem>>, %arg5: memref<8x128xf32, #tpu.memory_space<vmem>>, %arg6: memref<128x128xf32, #tpu.memory_space<vmem>>) attributes {dimension_semantics = [#tpu.dimension_semantics<parallel>], iteration_bounds = array<i64: 2>, scalar_prefetch = 0 : i64, scratch_operands = 2 : i64, tpu.core_type = #tpu.core_type<tc>, window_params = [{transform_indices = @transform_0, window_bounds = array<i64: 1, 8, 32>}, {pipeline_mode = #tpu.pipeline_mode<synchronous>, transform_indices = @transform_1, window_bounds = array<i64: 32, 384>}, {pipeline_mode = #tpu.pipeline_mode<synchronous>, transform_indices = @transform_2, window_bounds = array<i64: 1, 384>}, {transform_indices = @transform_3, window_bounds = array<i64: 1, 8, 128>}]} {
    %c0 = arith.constant 0 : index
    %c0_0 = arith.constant 0 : index
    %0 = vector.load %arg2[%c0, %c0_0] : memref<32x384xf32, #tpu.memory_space<vmem>>, vector<32x384xf32>
    %c0_1 = arith.constant 0 : index
    %c0_2 = arith.constant 0 : index
    %1 = vector.load %arg3[%c0_1, %c0_2] : memref<1x384xf32, #tpu.memory_space<vmem>>, vector<1x384xf32>
    %2 = tpu.iota {dimensions = array<i32: 1>} : vector<1x128xi32>
    %c32_i32 = arith.constant 32 : i32
    %3 = vector.broadcast %c32_i32 : i32 to vector<1x128xi32>
    %4 = arith.cmpi slt, %2, %3 : vector<1x128xi32>
    %cst = arith.constant 9.99999997E-7 : f32
    %cst_3 = arith.constant 0.000000e+00 : f32
    %5 = vector.broadcast %cst : f32 to vector<1x128xf32>
    %6 = vector.broadcast %cst_3 : f32 to vector<1x128xf32>
    %7 = arith.select %4, %5, %6 : vector<1x128xi1>, vector<1x128xf32>
    %cst_4 = arith.constant 0.000000e+00 : f32
    %8 = vector.broadcast %cst_4 : f32 to vector<128x128xf32>
    %c0_5 = arith.constant 0 : index
    %c0_6 = arith.constant 0 : index
    %9 = vector.load %arg6[%c0_5, %c0_6] : memref<128x128xf32, #tpu.memory_space<vmem>>, vector<128x128xf32>
    tpu.vector_store %arg6[%c0_5, %c0_6], %8 {strides = array<i32>} : memref<128x128xf32, #tpu.memory_space<vmem>>, vector<128x128xf32>,
    %c0_7 = arith.constant 0 : index
    %c0_8 = arith.constant 0 : index
    %c0_9 = arith.constant 0 : index
    %10 = vector.load %arg1[%c0_7, %c0_8, %c0_9] : memref<1x8x32xf32, #tpu.memory_space<vmem>>, vector<1x8x32xf32>
    %11 = vector.shape_cast %10 : vector<1x8x32xf32> to vector<8x32xf32>
    %cst_10 = arith.constant dense<0.000000e+00> : vector<8x384xf32>
    %12 = tpu.matmul %11, %0, %cst_10 {dimension_numbers = #tpu.dot_dimension_numbers<[1], [0], [0], [1], [0, 0, 1, 1], [], []>} : vector<8x32xf32>, vector<32x384xf32>, vector<8x384xf32> -> vector<8x384xf32>
    %13 = vector.broadcast %1 : vector<1x384xf32> to vector<8x384xf32>
    %14 = arith.addf %12, %13 : vector<8x384xf32>
    %15 = vector.extract_strided_slice %14 {offsets = [0, 0], sizes = [8, 128], strides = [1, 1]} : vector<8x384xf32> to vector<8x128xf32>
    %cst_11 = arith.constant 0.000000e+00 : f32
    %16 = vector.broadcast %cst_11 : f32 to vector<8x128xf32>
    %17 = arith.maximumf %15, %16 : vector<8x128xf32>
    %18 = vector.broadcast %7 : vector<1x128xf32> to vector<8x128xf32>
    %19 = arith.addf %17, %18 : vector<8x128xf32>
    %20 = vector.extract_strided_slice %14 {offsets = [0, 128], sizes = [8, 128], strides = [1, 1]} : vector<8x384xf32> to vector<8x128xf32>
    %cst_12 = arith.constant 0.000000e+00 : f32
    %21 = vector.broadcast %cst_12 : f32 to vector<8x128xf32>
    %22 = arith.maximumf %20, %21 : vector<8x128xf32>
    %23 = vector.broadcast %7 : vector<1x128xf32> to vector<8x128xf32>
    %24 = arith.addf %22, %23 : vector<8x128xf32>
    %25 = vector.extract_strided_slice %14 {offsets = [0, 256], sizes = [8, 128], strides = [1, 1]} : vector<8x384xf32> to vector<8x128xf32>
    %c0_13 = arith.constant 0 : index
    %c0_14 = arith.constant 0 : index
    %26 = vector.load %arg5[%c0_13, %c0_14] : memref<8x128xf32, #tpu.memory_space<vmem>>, vector<8x128xf32>
    tpu.vector_store %arg5[%c0_13, %c0_14], %19 {strides = array<i32>} : memref<8x128xf32, #tpu.memory_space<vmem>>, vector<8x128xf32>,
    %c0_15 = arith.constant 0 : index
    %c0_16 = arith.constant 0 : index
    %27 = vector.load %arg6[%c0_15, %c0_16] : memref<128x128xf32, #tpu.memory_space<vmem>>, vector<128x128xf32>
    %cst_17 = arith.constant dense<0.000000e+00> : vector<128x128xf32>
    %28 = tpu.matmul %24, %25, %cst_17 {dimension_numbers = #tpu.dot_dimension_numbers<[0], [0], [1], [1], [0, 1, 1, 1], [], []>} : vector<8x128xf32>, vector<8x128xf32>, vector<128x128xf32> -> vector<128x128xf32>
    %29 = arith.addf %27, %28 : vector<128x128xf32>
    %c0_18 = arith.constant 0 : index
    %c0_19 = arith.constant 0 : index
    %30 = vector.load %arg6[%c0_18, %c0_19] : memref<128x128xf32, #tpu.memory_space<vmem>>, vector<128x128xf32>
    tpu.vector_store %arg6[%c0_18, %c0_19], %29 {strides = array<i32>} : memref<128x128xf32, #tpu.memory_space<vmem>>, vector<128x128xf32>,
    %c0_20 = arith.constant 0 : index
    %c0_21 = arith.constant 0 : index
    %31 = vector.load %arg6[%c0_20, %c0_21] : memref<128x128xf32, #tpu.memory_space<vmem>>, vector<128x128xf32>
    %c0_22 = arith.constant 0 : index
    %c0_23 = arith.constant 0 : index
    %32 = vector.load %arg5[%c0_22, %c0_23] : memref<8x128xf32, #tpu.memory_space<vmem>>, vector<8x128xf32>
    %cst_24 = arith.constant dense<0.000000e+00> : vector<8x128xf32>
    %33 = tpu.matmul %32, %31, %cst_24 {dimension_numbers = #tpu.dot_dimension_numbers<[1], [0], [0], [1], [0, 0, 1, 1], [], []>} : vector<8x128xf32>, vector<128x128xf32>, vector<8x128xf32> -> vector<8x128xf32>
    %34 = vector.extract_strided_slice %33 {offsets = [0, 32], sizes = [8, 1], strides = [1, 1]} : vector<8x128xf32> to vector<8x1xf32>
    %cst_25 = arith.constant 9.99999997E-7 : f32
    %35 = vector.broadcast %cst_25 : f32 to vector<8x1xf32>
    %36 = arith.addf %34, %35 : vector<8x1xf32>
    %37 = tpu.reciprocal %36 {approx = true} : vector<8x1xf32> -> vector<8x1xf32>
    %38 = arith.mulf %36, %37 : vector<8x1xf32>
    %cst_26 = arith.constant 2.000000e+00 : f32
    %39 = vector.broadcast %cst_26 : f32 to vector<8x1xf32>
    %40 = arith.subf %39, %38 : vector<8x1xf32>
    %41 = arith.mulf %37, %40 : vector<8x1xf32>
    %42 = vector.broadcast %41 : vector<8x1xf32> to vector<8x128xf32>
    %43 = arith.mulf %33, %42 : vector<8x128xf32>
    %c0_27 = arith.constant 0 : index
    %c0_28 = arith.constant 0 : index
    %c0_29 = arith.constant 0 : index
    %44 = vector.load %arg4[%c0_27, %c0_28, %c0_29] : memref<1x8x128xf32, #tpu.memory_space<vmem>>, vector<1x8x128xf32>
    %45 = vector.shape_cast %44 : vector<1x8x128xf32> to vector<8x128xf32>
    %46 = vector.shape_cast %43 : vector<8x128xf32> to vector<1x8x128xf32>
    tpu.vector_store %arg4[%c0_27, %c0_28, %c0_29], %46 {strides = array<i32>} : memref<1x8x128xf32, #tpu.memory_space<vmem>>, vector<1x8x128xf32>,
    return
  }
  func.func @transform_0(%arg0: i32) -> (i32, i32, i32) {
    %c0_i32 = arith.constant 0 : i32
    %c0_i32_0 = arith.constant 0 : i32
    %c0_i32_1 = arith.constant 0 : i32
    return %arg0, %c0_i32, %c0_i32_0 : i32, i32, i32
  }
  func.func @transform_1(%arg0: i32) -> (i32, i32) {
    %c0_i32 = arith.constant 0 : i32
    %c0_i32_0 = arith.constant 0 : i32
    %c0_i32_1 = arith.constant 0 : i32
    return %c0_i32, %c0_i32_0 : i32, i32
  }
  func.func @transform_2(%arg0: i32) -> (i32, i32) {
    %c0_i32 = arith.constant 0 : i32
    %c0_i32_0 = arith.constant 0 : i32
    %c0_i32_1 = arith.constant 0 : i32
    return %c0_i32, %c0_i32_0 : i32, i32
  }
  func.func @transform_3(%arg0: i32) -> (i32, i32, i32) {
    %c0_i32 = arith.constant 0 : i32
    %c0_i32_0 = arith.constant 0 : i32
    %c0_i32_1 = arith.constant 0 : i32
    return %arg0, %c0_i32, %c0_i32_0 : i32, i32, i32
  }
}

</mosaic_0001>

<llo_original>
// kernel: tpu_custom_call.1
$region0: #{tpu_custom_call.1}
  #allocation0 [shape = 'u32[]', space=smem, size = 0x4, offset = 0x4, fixed_abs, tag = 'smem constant byte address 0x4 - core index']
  #allocation1 [shape = 'u32[72,128]{1,0:T(1,128)}', space=vmem, size = 0x9000, scoped, tag = 'internal scratch']
  #allocation2 [shape = 'f32[8,128]{1,0:T(8,128)}', space=vmem, size = 0x1000, scoped, tag = 'scratch operand']
  #allocation3 [shape = 'f32[128,128]{1,0:T(8,128)}', space=vmem, size = 0x10000, scoped, tag = 'scratch operand']
  %s0 = inlined_call_operand.hbm [shape: f32[2,8,32], index: 0, kind: input, shape index: {}]
  %s1 = inlined_call_operand.hbm [shape: f32[32,384], index: 1, kind: input, shape index: {}]
  %s2 = inlined_call_operand.hbm [shape: f32[1,384], index: 2, kind: input, shape index: {}]
  %s3 = inlined_call_operand.hbm [shape: f32[2,8,128], index: 3, kind: output, shape index: {}]
  %s4 = sld [smem:[#allocation0]]
  $region57: #{tpu_custom_call.1} parent=0
    _
  %s6 = ssub.s32 1, %s4
  %s7 = scalar_select 0, %s6, %s4
  $region1: #{tpu_custom_call.1} parent=0
    #allocation4 [shape = 'u8[8192]{0}', space=vmem, size = 0x2000, scoped, tag = 'input window, operand 0']
    #allocation5 [shape = 's32[2]{0}', space=sflag, size = 0x8, scoped, tag = 'scoped memory for tpu_custom_call.1']
    #allocation6 [shape = 's32[2]{0}', space=sflag, size = 0x8, scoped, tag = 'scoped memory for tpu_custom_call.1']
    #allocation7 [shape = 'u8[49152]{0}', space=vmem, size = 0xc000, scoped, tag = 'input window, operand 1, single buffered']
    #allocation8 [shape = 's32[1]{0}', space=sflag, size = 0x4, scoped, tag = 'scoped memory for tpu_custom_call.1']
    #allocation9 [shape = 'u8[1536]{0}', space=vmem, size = 0x800, scoped, tag = 'input window, operand 2, single buffered']
    #allocation10 [shape = 'u8[8192]{0}', space=vmem, size = 0x2000, scoped, tag = 'output window, operand 0']
    %8 = vsyncpa [#allocation5], 0
    %s9 = scalar_lea.sflag [#allocation5], 1
    %10 = vsyncpa %s9, 0
    %11 = vsyncpa [#allocation8], 0
    %12 = vsyncpa [#allocation6], 0
    %s13 = scalar_lea.sflag [#allocation6], 1
    %14 = vsyncpa %s13, 0
    loop: start=0, step=1, limit=4
    $region2: #{tpu_custom_call.1} parent=1 // loop_pre_header
      _
    $region3: #{tpu_custom_call.1} parent=1 // loop_header
      %s16 = sphi 0, %s20
      %p17 = scmp.ge.s32.totalorder %s16, 4
      %s26 = sphi 0, %s28
      %s29 = sphi 0, %s26
      %s30 = sphi 0, %s29
      %s46 = sphi 0, %s30
      %s50 = sphi 0, %s50
      %s52 = sphi 0, %s50
      %s53 = sphi 0, %s52
      %s67 = sphi 0, %s53
      %s71 = sphi 0, %s71
      %s73 = sphi 0, %s71
      %s74 = sphi 0, %s73
      %s88 = sphi 0, %s74
      %s94 = sphi 0, %s96
      %s97 = sphi 0, %s94
      %s98 = sphi 0, %s97
      %s114 = sphi 0, %s98
    $region4: #{tpu_custom_call.1} parent=1 // loop_header_branch
      %19 = sbr.rel (%p17) target = $region8
    $region5: #{tpu_custom_call.1} parent=1 // loop_body
      %s21 = ssub.s32 %s16, 1
      %s22 = ssub.s32 %s16, 2
      %s23 = sadd.s32 %s16, 1
      %s24 = ssub.s32 %s16, %s23
      %p25 = scmp.eq.s32.totalorder %s24, 0
      %s27 = sadd.s32 %s26, 1
      %s28 = scalar_select %p25, %s26, %s27
      %p31 = pneg %p25
      %p32 = scmp.eq.s32.totalorder %s16, 1
      %p33 = por %p31, %p32
      %p34 = scmp.ne.s32.totalorder %s26, %s29
      %p35 = scmp.eq.s32.totalorder %s16, 0
      %p36 = por %p34, %p35
      %p37 = scmp.ne.s32.totalorder %s26, %s29
      %p38 = scmp.eq.s32.totalorder %s21, 1
      %p39 = por %p37, %p38
      %p40 = scmp.ne.s32.totalorder %s29, %s30
      %p41 = scmp.eq.s32.totalorder %s21, 0
      %p42 = por %p40, %p41
      %p43 = scmp.ne.s32.totalorder %s29, %s30
      %p44 = scmp.eq.s32.totalorder %s22, 1
      %p45 = por %p43, %p44
      %p47 = scmp.ne.s32.totalorder %s30, %s46
      %p48 = scmp.eq.s32.totalorder %s22, 0
      %p49 = por %p47, %p48
      %s51 = sadd.s32 %s50, 1
      %p54 = scmp.eq.s32.totalorder %s16, 1
      %p55 = scmp.ne.s32.totalorder %s50, %s52
      %p56 = scmp.eq.s32.totalorder %s16, 0
      %p57 = por %p55, %p56
      %p58 = scmp.ne.s32.totalorder %s50, %s52
      %p59 = scmp.eq.s32.totalorder %s21, 1
      %p60 = por %p58, %p59
      %p61 = scmp.ne.s32.totalorder %s52, %s53
      %p62 = scmp.eq.s32.totalorder %s21, 0
      %p63 = por %p61, %p62
      %p64 = scmp.ne.s32.totalorder %s52, %s53
      %p65 = scmp.eq.s32.totalorder %s22, 1
      %p66 = por %p64, %p65
      %p68 = scmp.ne.s32.totalorder %s53, %s67
      %p69 = scmp.eq.s32.totalorder %s22, 0
      %p70 = por %p68, %p69
      %s72 = sadd.s32 %s71, 1
      %p75 = scmp.eq.s32.totalorder %s16, 1
      %p76 = scmp.ne.s32.totalorder %s71, %s73
      %p77 = scmp.eq.s32.totalorder %s16, 0
      %p78 = por %p76, %p77
      %p79 = scmp.ne.s32.totalorder %s71, %s73
      %p80 = scmp.eq.s32.totalorder %s21, 1
      %p81 = por %p79, %p80
      %p82 = scmp.ne.s32.totalorder %s73, %s74
      %p83 = scmp.eq.s32.totalorder %s21, 0
      %p84 = por %p82, %p83
      %p85 = scmp.ne.s32.totalorder %s73, %s74
      %p86 = scmp.eq.s32.totalorder %s22, 1
      %p87 = por %p85, %p86
      %p89 = scmp.ne.s32.totalorder %s74, %s88
      %p90 = scmp.eq.s32.totalorder %s22, 0
      %p91 = por %p89, %p90
      %s92 = ssub.s32 %s16, %s23
      %p93 = scmp.eq.s32.totalorder %s92, 0
      %s95 = sadd.s32 %s94, 1
      %s96 = scalar_select %p93, %s94, %s95
      %p99 = pneg %p93
      %p100 = scmp.eq.s32.totalorder %s16, 1
      %p101 = por %p99, %p100
      %p102 = scmp.ne.s32.totalorder %s94, %s97
      %p103 = scmp.eq.s32.totalorder %s16, 0
      %p104 = por %p102, %p103
      %p105 = scmp.ne.s32.totalorder %s94, %s97
      %p106 = scmp.eq.s32.totalorder %s21, 1
      %p107 = por %p105, %p106
      %p108 = scmp.ne.s32.totalorder %s97, %s98
      %p109 = scmp.eq.s32.totalorder %s21, 0
      %p110 = por %p108, %p109
      %p111 = scmp.ne.s32.totalorder %s97, %s98
      %p112 = scmp.eq.s32.totalorder %s22, 1
      %p113 = por %p111, %p112
      %p115 = scmp.ne.s32.totalorder %s98, %s114
      %p116 = scmp.eq.s32.totalorder %s22, 0
      %p117 = por %p115, %p116
      %p118 = scmp.le.s32.totalorder 1, %s16
      %p119 = scmp.lt.s32.totalorder %s16, 3
      %p120 = pnand %p118, %p119
      %p121 = pneg %p120
      // Predicated region
      $region9: #{tpu_custom_call.1} parent=5 // pred_check
        _
      $region10: #{tpu_custom_call.1} parent=5 // pred_check_branch
        %123 = sbr.rel (%p120) target = $region12
      $region11: #{tpu_custom_call.1} parent=5 // pred_region
        %s124 = ssub.s32 %s16, 1
        // Predicated region
        $region13: #{tpu_custom_call.1} parent=11 // pred_check
          %p125 = pneg %p63
        $region14: #{tpu_custom_call.1} parent=11 // pred_check_branch
          %127 = sbr.rel (%p125) target = $region16
        $region15: #{tpu_custom_call.1} parent=11 // pred_region
          %129 = vsyncadd [#allocation8], 0
          %s130 = sshll.u32 %s1, 4
          %s131 = int_to_ptr.hbm [resolvable:$true] %s130
          %s132 = sshll.u32 [#allocation7], 4
          %s133 = int_to_ptr.vmem [resolvable:$true] %s132
          %138 = dma.hbm_to_vmem [thread:$0]  %s131, 1536, %s133, [#allocation8], 384, 384, 24
        $region16: #{tpu_custom_call.1} parent=11 // pred_fallthru
          _
        // Predicated region
        $region17: #{tpu_custom_call.1} parent=11 // pred_check
          %p139 = pneg %p84
        $region18: #{tpu_custom_call.1} parent=11 // pred_check_branch
          %141 = sbr.rel (%p139) target = $region20
        $region19: #{tpu_custom_call.1} parent=11 // pred_region
          %143 = vsyncadd [#allocation8], 0
          %s145 = sshll.u32 %s2, 4
          %s146 = int_to_ptr.hbm [resolvable:$true] %s145
          %s147 = sshll.u32 [#allocation9], 4
          %s148 = int_to_ptr.vmem [resolvable:$true] %s147
          %150 = dma.hbm_to_vmem [thread:$0]  %s146, 48, %s148, [#allocation8]
        $region20: #{tpu_custom_call.1} parent=11 // pred_fallthru
          _
      $region12: #{tpu_custom_call.1} parent=5 // pred_fallthru
        _
      %p151 = scmp.lt.s32.totalorder %s16, 2
      // Predicated region
      $region21: #{tpu_custom_call.1} parent=5 // pred_check
        %p152 = pneg %p151
      $region22: #{tpu_custom_call.1} parent=5 // pred_check_branch
        %154 = sbr.rel (%p152) target = $region24
      $region23: #{tpu_custom_call.1} parent=5 // pred_region
        // Predicated region
        $region25: #{tpu_custom_call.1} parent=23 // pred_check
          %p155 = pneg %p36
        $region26: #{tpu_custom_call.1} parent=23 // pred_check_branch
          %157 = sbr.rel (%p155) target = $region28
        $region27: #{tpu_custom_call.1} parent=23 // pred_region
          %s158 = sand.u32 %s26, 1
          %s159 = scalar_lea.sflag [#allocation5], %s158
          %s160 = sand.u32 %s26, 1
          %s161 = smul.addr %s160, 8
          %s162 = scalar_lea.vmem [#allocation4], %s161
          %164 = vsyncadd %s159, 0
          %s165 = smul.addr %s16, 8
          %s166 = scalar_lea.hbm %s0, %s165
          %s168 = sshll.u32 %s166, 4
          %s169 = int_to_ptr.hbm [resolvable:$true] %s168
          %s170 = sshll.u32 %s162, 4
          %s171 = int_to_ptr.vmem [resolvable:$true] %s170
          %173 = dma.hbm_to_vmem [thread:$0]  %s169, 128, %s171, %s159
        $region28: #{tpu_custom_call.1} parent=23 // pred_fallthru
          _
      $region24: #{tpu_custom_call.1} parent=5 // pred_fallthru
        _
      %p174 = scmp.le.s32.totalorder 1, %s16
      %p175 = scmp.lt.s32.totalorder %s16, 3
      %p176 = pnand %p174, %p175
      %p177 = pneg %p176
      // Predicated region
      $region29: #{tpu_custom_call.1} parent=5 // pred_check
        _
      $region30: #{tpu_custom_call.1} parent=5 // pred_check_branch
        %179 = sbr.rel (%p176) target = $region32
      $region31: #{tpu_custom_call.1} parent=5 // pred_region
        %s180 = ssub.s32 %s16, 1
        %s181 = sand.u32 %s29, 1
        %s182 = scalar_lea.sflag [#allocation5], %s181
        %s183 = sand.u32 %s29, 1
        %s184 = smul.addr %s183, 8
        %s185 = scalar_lea.vmem [#allocation4], %s184
        // Predicated region
        $region33: #{tpu_custom_call.1} parent=31 // pred_check
          %p186 = pneg %p42
        $region34: #{tpu_custom_call.1} parent=31 // pred_check_branch
          %188 = sbr.rel (%p186) target = $region36
        $region35: #{tpu_custom_call.1} parent=31 // pred_region
          %190 = dma.done %s182, 128
        $region36: #{tpu_custom_call.1} parent=31 // pred_fallthru
          _
        // Predicated region
        $region37: #{tpu_custom_call.1} parent=31 // pred_check
          %p191 = pneg %p63
        $region38: #{tpu_custom_call.1} parent=31 // pred_check_branch
          %193 = sbr.rel (%p191) target = $region40
        $region39: #{tpu_custom_call.1} parent=31 // pred_region
          %195 = dma.done [#allocation8], 1536
        $region40: #{tpu_custom_call.1} parent=31 // pred_fallthru
          _
        // Predicated region
        $region41: #{tpu_custom_call.1} parent=31 // pred_check
          %p196 = pneg %p84
        $region42: #{tpu_custom_call.1} parent=31 // pred_check_branch
          %198 = sbr.rel (%p196) target = $region44
        $region43: #{tpu_custom_call.1} parent=31 // pred_region
          %200 = dma.done [#allocation8], 48
        $region44: #{tpu_custom_call.1} parent=31 // pred_fallthru
          _
        %s201 = sand.u32 %s29, 1
        %s202 = scalar_lea.sflag [#allocation5], %s201
        %s203 = sand.u32 %s29, 1
        %s204 = smul.addr %s203, 8
        %s205 = scalar_lea.vmem [#allocation4], %s204
        %p206 = pneg %p42
        %p207 = pneg %p39
        %p208 = pneg %p63
        %p209 = pneg %p60
        %p210 = pneg %p84
        %p211 = pneg %p81
        %p212 = pneg %p110
        %p213 = pneg %p107
        %s214 = sand.u32 %s97, 1
        %s215 = scalar_lea.sflag [#allocation6], %s214
        %s216 = sand.u32 %s97, 1
        %s217 = smul.addr %s216, 8
        %s218 = scalar_lea.vmem [#allocation10], %s217
        %v219 = vld [vmem:[#allocation7] sm:$0xff]
        %v220 = vld [vmem:[#allocation7 + $0x8] sm:$0xff]
        %v221 = vld [vmem:[#allocation7 + $0x10] sm:$0xff]
        %v222 = vld [vmem:[#allocation7 + $0x18] sm:$0xff]
        %v223 = vld [vmem:[#allocation7 + $0x20] sm:$0xff]
        %v224 = vld [vmem:[#allocation7 + $0x28] sm:$0xff]
        %v225 = vld [vmem:[#allocation7 + $0x30] sm:$0xff]
        %v226 = vld [vmem:[#allocation7 + $0x38] sm:$0xff]
        %v227 = vld [vmem:[#allocation7 + $0x40] sm:$0xff]
        %v228 = vld [vmem:[#allocation7 + $0x48] sm:$0xff]
        %v229 = vld [vmem:[#allocation7 + $0x50] sm:$0xff]
        %v230 = vld [vmem:[#allocation7 + $0x58] sm:$0xff]
        %v231 = vld [vmem:[#allocation9] sm:$0x7]
        %v232 = vlaneseq
        %v233 = vand.u32 %v232, 127
        %vm234 = vcmp.lt.s32.totalorder %v233, 32
        %v235 = vsel %vm234, 1e-06, 0.0
        %236 = vst [vmem:[#allocation3] sm:$0xff] 0.0
        %237 = vst [vmem:[#allocation3 + $0x8] sm:$0xff] 0.0
        %238 = vst [vmem:[#allocation3 + $0x10] sm:$0xff] 0.0
        %239 = vst [vmem:[#allocation3 + $0x18] sm:$0xff] 0.0
        %240 = vst [vmem:[#allocation3 + $0x20] sm:$0xff] 0.0
        %241 = vst [vmem:[#allocation3 + $0x28] sm:$0xff] 0.0
        %242 = vst [vmem:[#allocation3 + $0x30] sm:$0xff] 0.0
        %243 = vst [vmem:[#allocation3 + $0x38] sm:$0xff] 0.0
        %244 = vst [vmem:[#allocation3 + $0x40] sm:$0xff] 0.0
        %245 = vst [vmem:[#allocation3 + $0x48] sm:$0xff] 0.0
        %246 = vst [vmem:[#allocation3 + $0x50] sm:$0xff] 0.0
        %247 = vst [vmem:[#allocation3 + $0x58] sm:$0xff] 0.0
        %248 = vst [vmem:[#allocation3 + $0x60] sm:$0xff] 0.0
        %249 = vst [vmem:[#allocation3 + $0x68] sm:$0xff] 0.0
        %250 = vst [vmem:[#allocation3 + $0x70] sm:$0xff] 0.0
        %251 = vst [vmem:[#allocation3 + $0x78] sm:$0xff] 0.0
        %v252 = vld [vmem:[%s185] sm:$0xff]
        %v254 = vperm.slane %v231, 0
        %v255 = vperm.slane %v231, 1
        %v256 = vperm.slane %v231, 2
        %vm260 = vcmask 261120
        %v262 = vsel %vm260, %v252, 0
        %264 = vmatpush.msra.mxu0 0.0
        %265 = vmatpush.msra.mxu0 0.0
        %266 = vmatpush.msra.mxu0 0.0
        %267 = vmatpush.msra.mxu0 0.0
        %268 = vmatpush.msra.mxu0 0.0
        %269 = vmatpush.msra.mxu0 0.0
        %270 = vmatpush.msra.mxu0 0.0
        %271 = vmatpush.msra.mxu0 0.0
        %272 = vmatpush.msra.mxu0 0.0
        %273 = vmatpush.msra.mxu0 0.0
        %274 = vmatpush.msra.mxu0 0.0
        %275 = vmatpush.msra.mxu0 0.0
        %276 = vmatpush.msra.mxu0 %v228
        %277 = vmatpush.msra.mxu0 %v225
        %278 = vmatpush.msra.mxu0 %v222
        %279 = vmatpush.msra.mxu0 %v219
        %280 = vmatmul.f32.gmra.mxu0 %v262
        %v281 = vpop.f32.mrf.mxu0
        %v282 = vadd.f32 %v254, %v281
        %283 = vdwg.mxu0
        %284 = vmatpush.msra.mxu0 0.0
        %285 = vmatpush.msra.mxu0 0.0
        %286 = vmatpush.msra.mxu0 0.0
        %287 = vmatpush.msra.mxu0 0.0
        %288 = vmatpush.msra.mxu0 0.0
        %289 = vmatpush.msra.mxu0 0.0
        %290 = vmatpush.msra.mxu0 0.0
        %291 = vmatpush.msra.mxu0 0.0
        %292 = vmatpush.msra.mxu0 0.0
        %293 = vmatpush.msra.mxu0 0.0
        %294 = vmatpush.msra.mxu0 0.0
        %295 = vmatpush.msra.mxu0 0.0
        %296 = vmatpush.msra.mxu0 %v229
        %297 = vmatpush.msra.mxu0 %v226
        %298 = vmatpush.msra.mxu0 %v223
        %299 = vmatpush.msra.mxu0 %v220
        %300 = vmatmul.f32.gmra.mxu0 %v262
        %v301 = vpop.f32.mrf.mxu0
        %v302 = vadd.f32 %v255, %v301
        %303 = vdwg.mxu0
        %304 = vmatpush.msra.mxu0 0.0
        %305 = vmatpush.msra.mxu0 0.0
        %306 = vmatpush.msra.mxu0 0.0
        %307 = vmatpush.msra.mxu0 0.0
        %308 = vmatpush.msra.mxu0 0.0
        %309 = vmatpush.msra.mxu0 0.0
        %310 = vmatpush.msra.mxu0 0.0
        %311 = vmatpush.msra.mxu0 0.0
        %312 = vmatpush.msra.mxu0 0.0
        %313 = vmatpush.msra.mxu0 0.0
        %314 = vmatpush.msra.mxu0 0.0
        %315 = vmatpush.msra.mxu0 0.0
        %316 = vmatpush.msra.mxu0 %v230
        %317 = vmatpush.msra.mxu0 %v227
        %318 = vmatpush.msra.mxu0 %v224
        %319 = vmatpush.msra.mxu0 %v221
        %320 = vmatmul.f32.gmra.mxu0 %v262
        %v321 = vpop.f32.mrf.mxu0
        %v322 = vadd.f32 %v256, %v321
        %323 = vdwg.mxu0
        %v324 = vmax.f32 %v282, 0.0
        %v325 = vadd.f32 %v324, %v235
        %v326 = vmax.f32 %v302, 0.0
        %v327 = vadd.f32 %v326, %v235
        %328 = vst [vmem:[#allocation2] sm:$0xff] %v325
        %v329 = vld [vmem:[#allocation3] sm:$0xff]
        %v330 = vld [vmem:[#allocation3 + $0x8] sm:$0xff]
        %v331 = vld [vmem:[#allocation3 + $0x10] sm:$0xff]
        %v332 = vld [vmem:[#allocation3 + $0x18] sm:$0xff]
        %v333 = vld [vmem:[#allocation3 + $0x20] sm:$0xff]
        %v334 = vld [vmem:[#allocation3 + $0x28] sm:$0xff]
        %v335 = vld [vmem:[#allocation3 + $0x30] sm:$0xff]
        %v336 = vld [vmem:[#allocation3 + $0x38] sm:$0xff]
        %v337 = vld [vmem:[#allocation3 + $0x40] sm:$0xff]
        %v338 = vld [vmem:[#allocation3 + $0x48] sm:$0xff]
        %v339 = vld [vmem:[#allocation3 + $0x50] sm:$0xff]
        %v340 = vld [vmem:[#allocation3 + $0x58] sm:$0xff]
        %v341 = vld [vmem:[#allocation3 + $0x60] sm:$0xff]
        %v342 = vld [vmem:[#allocation3 + $0x68] sm:$0xff]
        %v343 = vld [vmem:[#allocation3 + $0x70] sm:$0xff]
        %v344 = vld [vmem:[#allocation3 + $0x78] sm:$0xff]
        %345 = vxpose.xlu0.b32.start [1/16] %v327, 128
        %346 = vxpose.xlu0.b32.cont [2/16] 0.0, 128
        %347 = vxpose.xlu0.b32.cont [3/16] 0.0, 128
        %348 = vxpose.xlu0.b32.cont [4/16] 0.0, 128
        %349 = vxpose.xlu0.b32.cont [5/16] 0.0, 128
        %350 = vxpose.xlu0.b32.cont [6/16] 0.0, 128
        %351 = vxpose.xlu0.b32.cont [7/16] 0.0, 128
        %352 = vxpose.xlu0.b32.cont [8/16] 0.0, 128
        %353 = vxpose.xlu0.b32.cont [9/16] 0.0, 128
        %354 = vxpose.xlu0.b32.cont [10/16] 0.0, 128
        %355 = vxpose.xlu0.b32.cont [11/16] 0.0, 128
        %356 = vxpose.xlu0.b32.cont [12/16] 0.0, 128
        %357 = vxpose.xlu0.b32.cont [13/16] 0.0, 128
        %358 = vxpose.xlu0.b32.cont [14/16] 0.0, 128
        %359 = vxpose.xlu0.b32.cont [15/16] 0.0, 128
        %360 = vxpose.xlu0.b32.end [16/16] 0.0, 128
        %v361 = vpop.trf.xlu0
        %v362 = vpop.trf.xlu0
        %v363 = vpop.trf.xlu0
        %v364 = vpop.trf.xlu0
        %v365 = vpop.trf.xlu0
        %v366 = vpop.trf.xlu0
        %v367 = vpop.trf.xlu0
        %v368 = vpop.trf.xlu0
        %v369 = vpop.trf.xlu0
        %v370 = vpop.trf.xlu0
        %v371 = vpop.trf.xlu0
        %v372 = vpop.trf.xlu0
        %v373 = vpop.trf.xlu0
        %v374 = vpop.trf.xlu0
        %v375 = vpop.trf.xlu0
        %v376 = vpop.trf.xlu0
        %vm377 = vcmask 64512
        %v379 = vsel %vm377, %v361, 0
        %v382 = vsel %vm377, %v362, 0
        %v385 = vsel %vm377, %v363, 0
        %v388 = vsel %vm377, %v364, 0
        %v391 = vsel %vm377, %v365, 0
        %v394 = vsel %vm377, %v366, 0
        %v397 = vsel %vm377, %v367, 0
        %v400 = vsel %vm377, %v368, 0
        %v403 = vsel %vm377, %v369, 0
        %v406 = vsel %vm377, %v370, 0
        %v409 = vsel %vm377, %v371, 0
        %v412 = vsel %vm377, %v372, 0
        %v415 = vsel %vm377, %v373, 0
        %v418 = vsel %vm377, %v374, 0
        %v421 = vsel %vm377, %v375, 0
        %v424 = vsel %vm377, %v376, 0
        %426 = vmatpush.msra.mxu0 0.0
        %427 = vmatpush.msra.mxu0 0.0
        %428 = vmatpush.msra.mxu0 0.0
        %429 = vmatpush.msra.mxu0 0.0
        %430 = vmatpush.msra.mxu0 0.0
        %431 = vmatpush.msra.mxu0 0.0
        %432 = vmatpush.msra.mxu0 0.0
        %433 = vmatpush.msra.mxu0 0.0
        %434 = vmatpush.msra.mxu0 0.0
        %435 = vmatpush.msra.mxu0 0.0
        %436 = vmatpush.msra.mxu0 0.0
        %437 = vmatpush.msra.mxu0 0.0
        %438 = vmatpush.msra.mxu0 0.0
        %439 = vmatpush.msra.mxu0 0.0
        %440 = vmatpush.msra.mxu0 0.0
        %441 = vmatpush.msra.mxu0 %v322
        %442 = vmatmul.f32.gmra.mxu0 %v379
        %v443 = vpop.f32.mrf.mxu0
        %v444 = vadd.f32 0.0, %v443
        %445 = vmatmul.f32.gmra.mxu0 %v382
        %v446 = vpop.f32.mrf.mxu0
        %v447 = vadd.f32 0.0, %v446
        %448 = vmatmul.f32.gmra.mxu0 %v385
        %v449 = vpop.f32.mrf.mxu0
        %v450 = vadd.f32 0.0, %v449
        %451 = vmatmul.f32.gmra.mxu0 %v388
        %v452 = vpop.f32.mrf.mxu0
        %v453 = vadd.f32 0.0, %v452
        %454 = vmatmul.f32.gmra.mxu0 %v391
        %v455 = vpop.f32.mrf.mxu0
        %v456 = vadd.f32 0.0, %v455
        %457 = vmatmul.f32.gmra.mxu0 %v394
        %v458 = vpop.f32.mrf.mxu0
        %v459 = vadd.f32 0.0, %v458
        %460 = vmatmul.f32.gmra.mxu0 %v397
        %v461 = vpop.f32.mrf.mxu0
        %v462 = vadd.f32 0.0, %v461
        %463 = vmatmul.f32.gmra.mxu0 %v400
        %v464 = vpop.f32.mrf.mxu0
        %v465 = vadd.f32 0.0, %v464
        %466 = vmatmul.f32.gmra.mxu0 %v403
        %v467 = vpop.f32.mrf.mxu0
        %v468 = vadd.f32 0.0, %v467
        %469 = vmatmul.f32.gmra.mxu0 %v406
        %v470 = vpop.f32.mrf.mxu0
        %v471 = vadd.f32 0.0, %v470
        %472 = vmatmul.f32.gmra.mxu0 %v409
        %v473 = vpop.f32.mrf.mxu0
        %v474 = vadd.f32 0.0, %v473
        %475 = vmatmul.f32.gmra.mxu0 %v412
        %v476 = vpop.f32.mrf.mxu0
        %v477 = vadd.f32 0.0, %v476
        %478 = vmatmul.f32.gmra.mxu0 %v415
        %v479 = vpop.f32.mrf.mxu0
        %v480 = vadd.f32 0.0, %v479
        %481 = vmatmul.f32.gmra.mxu0 %v418
        %v482 = vpop.f32.mrf.mxu0
        %v483 = vadd.f32 0.0, %v482
        %484 = vmatmul.f32.gmra.mxu0 %v421
        %v485 = vpop.f32.mrf.mxu0
        %v486 = vadd.f32 0.0, %v485
        %487 = vmatmul.f32.gmra.mxu0 %v424
        %v488 = vpop.f32.mrf.mxu0
        %v489 = vadd.f32 0.0, %v488
        %490 = vdwg.mxu0
        %v491 = vadd.f32 %v329, %v444
        %v492 = vadd.f32 %v330, %v447
        %v493 = vadd.f32 %v331, %v450
        %v494 = vadd.f32 %v332, %v453
        %v495 = vadd.f32 %v333, %v456
        %v496 = vadd.f32 %v334, %v459
        %v497 = vadd.f32 %v335, %v462
        %v498 = vadd.f32 %v336, %v465
        %v499 = vadd.f32 %v337, %v468
        %v500 = vadd.f32 %v338, %v471
        %v501 = vadd.f32 %v339, %v474
        %v502 = vadd.f32 %v340, %v477
        %v503 = vadd.f32 %v341, %v480
        %v504 = vadd.f32 %v342, %v483
        %v505 = vadd.f32 %v343, %v486
        %v506 = vadd.f32 %v344, %v489
        %507 = vst [vmem:[#allocation3] sm:$0xff] %v491
        %508 = vst [vmem:[#allocation3 + $0x8] sm:$0xff] %v492
        %509 = vst [vmem:[#allocation3 + $0x10] sm:$0xff] %v493
        %510 = vst [vmem:[#allocation3 + $0x18] sm:$0xff] %v494
        %511 = vst [vmem:[#allocation3 + $0x20] sm:$0xff] %v495
        %512 = vst [vmem:[#allocation3 + $0x28] sm:$0xff] %v496
        %513 = vst [vmem:[#allocation3 + $0x30] sm:$0xff] %v497
        %514 = vst [vmem:[#allocation3 + $0x38] sm:$0xff] %v498
        %515 = vst [vmem:[#allocation3 + $0x40] sm:$0xff] %v499
        %516 = vst [vmem:[#allocation3 + $0x48] sm:$0xff] %v500
        %517 = vst [vmem:[#allocation3 + $0x50] sm:$0xff] %v501
        %518 = vst [vmem:[#allocation3 + $0x58] sm:$0xff] %v502
        %519 = vst [vmem:[#allocation3 + $0x60] sm:$0xff] %v503
        %520 = vst [vmem:[#allocation3 + $0x68] sm:$0xff] %v504
        %521 = vst [vmem:[#allocation3 + $0x70] sm:$0xff] %v505
        %522 = vst [vmem:[#allocation3 + $0x78] sm:$0xff] %v506
        %v523 = vld [vmem:[#allocation3] sm:$0xff]
        %v524 = vld [vmem:[#allocation3 + $0x8] sm:$0xff]
        %v525 = vld [vmem:[#allocation3 + $0x10] sm:$0xff]
        %v526 = vld [vmem:[#allocation3 + $0x18] sm:$0xff]
        %v527 = vld [vmem:[#allocation3 + $0x20] sm:$0xff]
        %v528 = vld [vmem:[#allocation3 + $0x28] sm:$0xff]
        %v529 = vld [vmem:[#allocation3 + $0x30] sm:$0xff]
        %v530 = vld [vmem:[#allocation3 + $0x38] sm:$0xff]
        %v531 = vld [vmem:[#allocation3 + $0x40] sm:$0xff]
        %v532 = vld [vmem:[#allocation3 + $0x48] sm:$0xff]
        %v533 = vld [vmem:[#allocation3 + $0x50] sm:$0xff]
        %v534 = vld [vmem:[#allocation3 + $0x58] sm:$0xff]
        %v535 = vld [vmem:[#allocation3 + $0x60] sm:$0xff]
        %v536 = vld [vmem:[#allocation3 + $0x68] sm:$0xff]
        %v537 = vld [vmem:[#allocation3 + $0x70] sm:$0xff]
        %v538 = vld [vmem:[#allocation3 + $0x78] sm:$0xff]
        %v539 = vld [vmem:[#allocation2] sm:$0xff]
        %540 = vmatpush.msra.mxu0 %v538
        %541 = vmatpush.msra.mxu0 %v537
        %542 = vmatpush.msra.mxu0 %v536
        %543 = vmatpush.msra.mxu0 %v535
        %544 = vmatpush.msra.mxu0 %v534
        %545 = vmatpush.msra.mxu0 %v533
        %546 = vmatpush.msra.mxu0 %v532
        %547 = vmatpush.msra.mxu0 %v531
        %548 = vmatpush.msra.mxu0 %v530
        %549 = vmatpush.msra.mxu0 %v529
        %550 = vmatpush.msra.mxu0 %v528
        %551 = vmatpush.msra.mxu0 %v527
        %552 = vmatpush.msra.mxu0 %v526
        %553 = vmatpush.msra.mxu0 %v525
        %554 = vmatpush.msra.mxu0 %v524
        %555 = vmatpush.msra.mxu0 %v523
        %556 = vmatmul.f32.gmra.mxu0 %v539
        %v557 = vpop.f32.mrf.mxu0
        %v558 = vadd.f32 0.0, %v557
        %559 = vdwg.mxu0
        %v560 = vadd.f32 %v558, 1e-06
        %v561 = vrcp.pop %v560
        %v562 = vmul.f32 %v560, %v561
        %v563 = vsub.f32 2.0, %v562
        %v564 = vmul.f32 %v561, %v563
        %566 = vset.pattern.permute.xlu0 32
        %567 = vperm.xlu0 %566, %v564
        %v568 = vpop.permute.xlu0 %567
        %v570 = vmul.f32 %v558, %v568
        %571 = vst [vmem:[%s218] sm:$0xff] %v570
        %s572 = sand.u32 %s97, 1
        %s573 = scalar_lea.sflag [#allocation6], %s572
        %s574 = sand.u32 %s97, 1
        %s575 = smul.addr %s574, 8
        %s576 = scalar_lea.vmem [#allocation10], %s575
        // Predicated region
        $region45: #{tpu_custom_call.1} parent=31 // pred_check
          %p577 = pneg %p107
        $region46: #{tpu_custom_call.1} parent=31 // pred_check_branch
          %579 = sbr.rel (%p577) target = $region48
        $region47: #{tpu_custom_call.1} parent=31 // pred_region
          %581 = vsyncadd %s573, 0
          %s582 = smul.addr %s21, 8
          %s583 = scalar_lea.hbm %s3, %s582
          %s585 = sshll.u32 %s576, 4
          %s586 = int_to_ptr.vmem [resolvable:$true] %s585
          %s587 = sshll.u32 %s583, 4
          %s588 = int_to_ptr.hbm [resolvable:$true] %s587
          %590 = dma.vmem_to_hbm [thread:$0]  %s586, 128, %s588, %s573
        $region48: #{tpu_custom_call.1} parent=31 // pred_fallthru
          _
      $region32: #{tpu_custom_call.1} parent=5 // pred_fallthru
        _
      %p591 = scmp.le.s32.totalorder 2, %s16
      // Predicated region
      $region49: #{tpu_custom_call.1} parent=5 // pred_check
        %p592 = pneg %p591
      $region50: #{tpu_custom_call.1} parent=5 // pred_check_branch
        %594 = sbr.rel (%p592) target = $region52
      $region51: #{tpu_custom_call.1} parent=5 // pred_region
        %s595 = ssub.s32 %s16, 2
        // Predicated region
        $region53: #{tpu_custom_call.1} parent=51 // pred_check
          %p596 = pneg %p113
        $region54: #{tpu_custom_call.1} parent=51 // pred_check_branch
          %598 = sbr.rel (%p596) target = $region56
        $region55: #{tpu_custom_call.1} parent=51 // pred_region
          %s599 = sand.u32 %s98, 1
          %s600 = scalar_lea.sflag [#allocation6], %s599
          %s601 = sand.u32 %s98, 1
          %s602 = smul.addr %s601, 8
          %s603 = scalar_lea.vmem [#allocation10], %s602
          %605 = dma.done %s600, 128
        $region56: #{tpu_custom_call.1} parent=51 // pred_fallthru
          _
      $region52: #{tpu_custom_call.1} parent=5 // pred_fallthru
        _
    $region6: #{tpu_custom_call.1} parent=1 // loop_footer
      %s20 = sadd.s32 1, %s16
    $region7: #{tpu_custom_call.1} parent=1 // loop_footer_branch
      %15 = sbr.rel target = $region3
    $region8: #{tpu_custom_call.1} parent=1 // loop_exit
      _
    %606 = vsyncpa [#allocation5], 1
    %s607 = scalar_lea.sflag [#allocation5], 1
    %608 = vsyncpa %s607, 1
    %609 = vsyncpa [#allocation8], 1
    %610 = vsyncpa [#allocation6], 1
    %s611 = scalar_lea.sflag [#allocation6], 1
    %612 = vsyncpa %s611, 1

</llo_original>
